<compile_context>
chip_gen: v5e
topology: v5e:2x2
jax: 0.10.0
libtpu: 0.0.40
codegen_flags: <defaults>
</compile_context>

<pallas_src>
import jax
import jax.numpy as jnp
from jax.experimental import pallas as pl
from jax.experimental.pallas import tpu as pltpu


def _linear_kernel(x_ref, w_ref, b_ref, o_ref):
    # x_ref: (TB, F) bf16 batch tile
    # w_ref: (C_pad, F) bf16 resident weight (PyTorch layout, no transpose)
    # b_ref: (1, C_pad) f32 resident bias
    # o_ref: (TB, C_pad) output tile
    acc = jax.lax.dot_general(
        x_ref[...], w_ref[...],
        dimension_numbers=(((1,), (1,)), ((), ())),   # contract F with F
        preferred_element_type=jnp.float32)
    o_ref[...] = (acc + b_ref[...]).astype(o_ref.dtype)


def resnet_class_classifier_forward(x, w, b, T=1.0, reverse=False,
                                    constant=1.0, *, batch_tile=512,
                                    use_pallas=None,
                                    compute_dtype=jnp.bfloat16):
    """Forward of Resnet_Class_classifier: (optional grad_reverse) + Linear.

    grad_reverse is identity in the forward pass; T and constant do not affect
    the forward computation (matches the PyTorch module).
    """
    # TODO(synk): grad_reverse backward (grad * -constant) is an autograd
    # concern and is not represented in this forward-only kernel.
    B, F = x.shape
    C = w.shape[0]
    out_dtype = x.dtype

    if use_pallas is None:
        # Tiny heads: launch + DMA setup dominates; let XLA fuse a GEMV.
        use_pallas = (B * F * C) >= (1 << 22)
    if not use_pallas:
        acc = jnp.dot(x, w.T, preferred_element_type=jnp.float32)
        return (acc + b.astype(jnp.float32)).astype(out_dtype)

    # Lane-dense padding of the class dimension (multiple of 128).
    c_pad = pl.cdiv(C, 128) * 128
    # Batch tile: multiple of 8 (sublane), capped at the (rounded-up) batch.
    tb = max(8, min(batch_tile, pl.cdiv(B, 8) * 8))
    tb = pl.cdiv(tb, 8) * 8
    b_pad = pl.cdiv(B, tb) * tb

    x_p = jnp.pad(x, ((0, b_pad - B), (0, 0))).astype(compute_dtype)
    w_p = jnp.pad(w, ((0, c_pad - C), (0, 0))).astype(compute_dtype)
    bias_p = jnp.pad(b, (0, c_pad - C)).astype(jnp.float32).reshape(1, c_pad)

    grid = (b_pad // tb,)

    cost = pl.CostEstimate(
        flops=2 * b_pad * F * c_pad,
        transcendentals=0,
        bytes_accessed=(x_p.size * x_p.dtype.itemsize
                        + w_p.size * w_p.dtype.itemsize
                        + bias_p.size * bias_p.dtype.itemsize
                        + b_pad * c_pad * jnp.dtype(out_dtype).itemsize))

    y_pad = pl.pallas_call(
        _linear_kernel,
        out_shape=jax.ShapeDtypeStruct((b_pad, c_pad), out_dtype),
        grid=grid,
        in_specs=[
            pl.BlockSpec((tb, F), lambda i: (i, 0)),      # pipelined x tile
            pl.BlockSpec((c_pad, F), lambda i: (0, 0)),   # resident weight
            pl.BlockSpec((1, c_pad), lambda i: (0, 0)),   # resident bias
        ],
        out_specs=pl.BlockSpec((tb, c_pad), lambda i: (i, 0)),
        compiler_params=pltpu.CompilerParams(
            dimension_semantics=("parallel",),            # v7x: 2 TCs split batch
            vmem_limit_bytes=64 << 20),
        cost_estimate=cost,
    )(x_p, w_p, bias_p)

    return y_pad[:B, :C]


if __name__ == "__main__":
    # Small shapes consistent with a ResNet classifier head:
    #   batch=2, feature dim=32 (stand-in for 512/2048), num_classes=8.
    B, F, C = 2, 32, 8

    key = jax.random.PRNGKey(0)
    kx, kw, kb = jax.random.split(key, 3)

    x = jax.random.normal(kx, (B, F), dtype=jnp.float32)
    bound = 1.0 / float(jnp.sqrt(jnp.float32(F)))
    w = jax.random.uniform(kw, (C, F), dtype=jnp.float32,
                           minval=-bound, maxval=bound)
    b = jax.random.uniform(kb, (C,), dtype=jnp.float32,
                           minval=-bound, maxval=bound)

    # Force the Pallas path even at toy shapes so the kernel is exercised
    # (reverse=True path is identity in forward).
    y = resnet_class_classifier_forward(x, w, b, T=1.0, reverse=True,
                                        constant=1.0, use_pallas=True)
    y = jax.block_until_ready(y)

    assert y.shape == (B, C)

    # Loose check against the full-f32 reference (kernel uses bf16 operands).
    y_ref = x @ w.T + b
    assert jnp.allclose(y, y_ref, atol=5e-2, rtol=5e-2), "mismatch vs f32 reference"

    # Tighter check against a bf16-operand / f32-accumulate reference.
    y_ref_bf16 = (jnp.dot(x.astype(jnp.bfloat16), w.astype(jnp.bfloat16).T,
                          preferred_element_type=jnp.float32)
                  + b.astype(jnp.float32))
    assert jnp.allclose(y, y_ref_bf16, atol=2e-3, rtol=2e-3), "mismatch vs bf16 reference"

    print("KERNEL_OK")
</pallas_src>

<mosaic_0001>
module attributes {stable_mosaic.version = 11 : i64} {
  func.func @_linear_kernel(%arg0: i32, %arg1: memref<8x32xbf16, #tpu.memory_space<vmem>>, %arg2: memref<128x32xbf16, #tpu.memory_space<vmem>>, %arg3: memref<1x128xf32, #tpu.memory_space<vmem>>, %arg4: memref<8x128xf32, #tpu.memory_space<vmem>>) attributes {dimension_semantics = [#tpu.dimension_semantics<parallel>], iteration_bounds = array<i64: 1>, scalar_prefetch = 0 : i64, scratch_operands = 0 : i64, tpu.core_type = #tpu.core_type<tc>, window_params = [{transform_indices = @transform_0, window_bounds = array<i64: 8, 32>}, {pipeline_mode = #tpu.pipeline_mode<synchronous>, transform_indices = @transform_1, window_bounds = array<i64: 128, 32>}, {pipeline_mode = #tpu.pipeline_mode<synchronous>, transform_indices = @transform_2, window_bounds = array<i64: 1, 128>}, {transform_indices = @transform_3, window_bounds = array<i64: 8, 128>}]} {
    %c0 = arith.constant 0 : index
    %c0_0 = arith.constant 0 : index
    %0 = vector.load %arg1[%c0, %c0_0] : memref<8x32xbf16, #tpu.memory_space<vmem>>, vector<8x32xbf16>
    %c0_1 = arith.constant 0 : index
    %c0_2 = arith.constant 0 : index
    %1 = vector.load %arg2[%c0_1, %c0_2] : memref<128x32xbf16, #tpu.memory_space<vmem>>, vector<128x32xbf16>
    %cst = arith.constant dense<0.000000e+00> : vector<8x128xf32>
    %2 = tpu.matmul %0, %1, %cst {dimension_numbers = #tpu.dot_dimension_numbers<[1], [1], [0], [0], [0, 0, 1, 0], [], []>} : vector<8x32xbf16>, vector<128x32xbf16>, vector<8x128xf32> -> vector<8x128xf32>
    %c0_3 = arith.constant 0 : index
    %c0_4 = arith.constant 0 : index
    %3 = vector.load %arg3[%c0_3, %c0_4] : memref<1x128xf32, #tpu.memory_space<vmem>>, vector<1x128xf32>
    %4 = vector.broadcast %3 : vector<1x128xf32> to vector<8x128xf32>
    %5 = arith.addf %2, %4 : vector<8x128xf32>
    %c0_5 = arith.constant 0 : index
    %c0_6 = arith.constant 0 : index
    %6 = vector.load %arg4[%c0_5, %c0_6] : memref<8x128xf32, #tpu.memory_space<vmem>>, vector<8x128xf32>
    tpu.vector_store %arg4[%c0_5, %c0_6], %5 {strides = array<i32>} : memref<8x128xf32, #tpu.memory_space<vmem>>, vector<8x128xf32>,
    return
  }
  func.func @transform_0(%arg0: i32) -> (i32, i32) {
    %c0_i32 = arith.constant 0 : i32
    %c0_i32_0 = arith.constant 0 : i32
    return %arg0, %c0_i32 : i32, i32
  }
  func.func @transform_1(%arg0: i32) -> (i32, i32) {
    %c0_i32 = arith.constant 0 : i32
    %c0_i32_0 = arith.constant 0 : i32
    %c0_i32_1 = arith.constant 0 : i32
    return %c0_i32, %c0_i32_0 : i32, i32
  }
  func.func @transform_2(%arg0: i32) -> (i32, i32) {
    %c0_i32 = arith.constant 0 : i32
    %c0_i32_0 = arith.constant 0 : i32
    %c0_i32_1 = arith.constant 0 : i32
    return %c0_i32, %c0_i32_0 : i32, i32
  }
  func.func @transform_3(%arg0: i32) -> (i32, i32) {
    %c0_i32 = arith.constant 0 : i32
    %c0_i32_0 = arith.constant 0 : i32
    return %arg0, %c0_i32 : i32, i32
  }
}

</mosaic_0001>

<llo_original>
// kernel: tpu_custom_call.1
$region0: #{tpu_custom_call.1}
  #allocation0 [shape = 'u32[]', space=smem, size = 0x4, offset = 0x4, fixed_abs, tag = 'smem constant byte address 0x4 - core index']
  #allocation1 [shape = 'u32[72,128]{1,0:T(1,128)}', space=vmem, size = 0x9000, scoped, tag = 'internal scratch']
  %s0 = inlined_call_operand.vmem [shape: bf16[8,32], index: 0, kind: input, shape index: {}]
  %s1 = inlined_call_operand.vmem [shape: bf16[128,32], index: 1, kind: input, shape index: {}]
  %s2 = inlined_call_operand.vmem [shape: f32[1,128], index: 2, kind: input, shape index: {}]
  %s3 = inlined_call_operand.hbm [shape: f32[8,128], index: 3, kind: output, shape index: {}]
  %s4 = sld [smem:[#allocation0]]
  $region22: #{tpu_custom_call.1} parent=0
    _
  %s6 = ssub.s32 1, %s4
  %s7 = scalar_select 0, %s6, %s4
  $region1: #{tpu_custom_call.1} parent=0
    #allocation2 [shape = 'u8[4096]{0}', space=vmem, size = 0x1000, scoped, tag = 'output window, operand 0, single buffered']
    #allocation3 [shape = 's32[1]{0}', space=sflag, size = 0x4, scoped, tag = 'scoped memory for tpu_custom_call.1']
    %8 = vsyncpa [#allocation3], 0
    // Predicated region
    $region2: #{tpu_custom_call.1} parent=1 // pred_check
      _
    $region3: #{tpu_custom_call.1} parent=1 // pred_check_branch
      %10 = sbr.rel (0) target = $region5
    $region4: #{tpu_custom_call.1} parent=1 // pred_region
      _
    $region5: #{tpu_custom_call.1} parent=1 // pred_fallthru
      _
    // Predicated region
    $region6: #{tpu_custom_call.1} parent=1 // pred_check
      _
    $region7: #{tpu_custom_call.1} parent=1 // pred_check_branch
      %12 = sbr.rel (0) target = $region9
    $region8: #{tpu_custom_call.1} parent=1 // pred_region
      _
    $region9: #{tpu_custom_call.1} parent=1 // pred_fallthru
      _
    // Predicated region
    $region10: #{tpu_custom_call.1} parent=1 // pred_check
      _
    $region11: #{tpu_custom_call.1} parent=1 // pred_check_branch
      %14 = sbr.rel (0) target = $region13
    $region12: #{tpu_custom_call.1} parent=1 // pred_region
      _
    $region13: #{tpu_custom_call.1} parent=1 // pred_fallthru
      _
    %v15 = vld [vmem:[%s0] sm:$0xf]
    %v16 = vld [vmem:[%s1] sm:$0xf]
    %v17 = vld [vmem:[%s1 + $0x4] sm:$0xf]
    %v18 = vld [vmem:[%s1 + $0x8] sm:$0xf]
    %v19 = vld [vmem:[%s1 + $0xc] sm:$0xf]
    %v20 = vld [vmem:[%s1 + $0x10] sm:$0xf]
    %v21 = vld [vmem:[%s1 + $0x14] sm:$0xf]
    %v22 = vld [vmem:[%s1 + $0x18] sm:$0xf]
    %v23 = vld [vmem:[%s1 + $0x1c] sm:$0xf]
    %v24 = vld [vmem:[%s1 + $0x20] sm:$0xf]
    %v25 = vld [vmem:[%s1 + $0x24] sm:$0xf]
    %v26 = vld [vmem:[%s1 + $0x28] sm:$0xf]
    %v27 = vld [vmem:[%s1 + $0x2c] sm:$0xf]
    %v28 = vld [vmem:[%s1 + $0x30] sm:$0xf]
    %v29 = vld [vmem:[%s1 + $0x34] sm:$0xf]
    %v30 = vld [vmem:[%s1 + $0x38] sm:$0xf]
    %v31 = vld [vmem:[%s1 + $0x3c] sm:$0xf]
    %v32 = vld [vmem:[%s2] sm:$0x1]
    %v34 = vperm.slane %v32, 0
    %v52 = vunpack.c.l.b16 %v16
    %v53 = vunpack.c.l.b16 %v17
    %v54 = vunpack.c.l.b16 %v18
    %v55 = vunpack.c.l.b16 %v19
    %v56 = vunpack.c.l.b16 %v20
    %v57 = vunpack.c.l.b16 %v21
    %v58 = vunpack.c.l.b16 %v22
    %v59 = vunpack.c.l.b16 %v23
    %v60 = vunpack.c.l.b16 %v24
    %v61 = vunpack.c.l.b16 %v25
    %v62 = vunpack.c.l.b16 %v26
    %v63 = vunpack.c.l.b16 %v27
    %v64 = vunpack.c.l.b16 %v28
    %v65 = vunpack.c.l.b16 %v29
    %v66 = vunpack.c.l.b16 %v30
    %v67 = vunpack.c.l.b16 %v31
    %v68 = vpack.c.b16 %v53, %v52
    %v69 = vpack.c.b16 %v55, %v54
    %v70 = vpack.c.b16 %v57, %v56
    %v71 = vpack.c.b16 %v59, %v58
    %v72 = vpack.c.b16 %v61, %v60
    %v73 = vpack.c.b16 %v63, %v62
    %v74 = vpack.c.b16 %v65, %v64
    %v75 = vpack.c.b16 %v67, %v66
    %vm76 = vcmask 261120
    %v78 = vsel %vm76, %v15, 0
    %v81 = vsel %vm76, %v68, 0
    %v84 = vsel %vm76, %v69, 0
    %v87 = vsel %vm76, %v70, 0
    %v90 = vsel %vm76, %v71, 0
    %v93 = vsel %vm76, %v72, 0
    %v96 = vsel %vm76, %v73, 0
    %v99 = vsel %vm76, %v74, 0
    %v102 = vsel %vm76, %v75, 0
    %104 = vmatpush.bf16.xpose.msra.mxu0 %v102
    %105 = vmatpush.bf16.xpose.msra.mxu0 %v99
    %106 = vmatpush.bf16.xpose.msra.mxu0 %v96
    %107 = vmatpush.bf16.xpose.msra.mxu0 %v93
    %108 = vmatpush.bf16.xpose.msra.mxu0 %v90
    %109 = vmatpush.bf16.xpose.msra.mxu0 %v87
    %110 = vmatpush.bf16.xpose.msra.mxu0 %v84
    %111 = vmatpush.bf16.xpose.msra.mxu0 %v81
    %112 = vmatmul.bf16.gmra.mxu0 %v78
    %v113 = vpop.f32.mrf.mxu0
    %v114 = vadd.f32 %v34, %v113
    %v115 = vpop.f32.mrf.mxu0
    %116 = vdwg.mxu0
    %117 = vst [vmem:[#allocation2] sm:$0xff] %v114
    // Predicated region
    $region14: #{tpu_custom_call.1} parent=1 // pred_check
      _
    $region15: #{tpu_custom_call.1} parent=1 // pred_check_branch
      %119 = sbr.rel (0) target = $region17
    $region16: #{tpu_custom_call.1} parent=1 // pred_region
      %121 = vsyncadd [#allocation3], 0
      %s123 = sshll.u32 [#allocation2], 4
      %s124 = int_to_ptr.vmem [resolvable:$true] %s123
      %s125 = sshll.u32 %s3, 4
      %s126 = int_to_ptr.hbm [resolvable:$true] %s125
      %128 = dma.vmem_to_hbm [thread:$0]  %s124, 128, %s126, [#allocation3]
    $region17: #{tpu_custom_call.1} parent=1 // pred_fallthru
      _
    // Predicated region
    $region18: #{tpu_custom_call.1} parent=1 // pred_check
      _
    $region19: #{tpu_custom_call.1} parent=1 // pred_check_branch
      %130 = sbr.rel (0) target = $region21
    $region20: #{tpu_custom_call.1} parent=1 // pred_region
      %132 = dma.done [#allocation3], 128
    $region21: #{tpu_custom_call.1} parent=1 // pred_fallthru
      _
    %133 = vsyncpa [#allocation3], 1

</llo_original>
